<compile_context>
chip_gen: v6e
topology: v6e:2x2x1
jax: 0.10.0
libtpu: 0.0.40
codegen_flags: <defaults>
</compile_context>

<pallas_src>
import functools
import math

import numpy as np

import jax
import jax.numpy as jnp
from jax.experimental import pallas as pl
from jax.experimental.pallas import tpu as pltpu


_LANES = 128
_FAST_PATH_BYTES = 1 << 20   # below this, XLA's native transpose wins


# ----------------------------------------------------------------------------
# Per-generation configuration (channel caps, tile target, VMEM limit).
# ----------------------------------------------------------------------------
@functools.lru_cache(maxsize=None)
def _gen_config():
    kind = ""
    try:
        kind = jax.devices()[0].device_kind.lower()
    except Exception:  # pragma: no cover - defensive (e.g. no devices yet)
        pass
    if ("v5 lite" in kind) or ("v5e" in kind) or ("v5lite" in kind):
        # 197 TF/s bf16 vs 0.82 TB/s -> only tiny C stays memory-bound.
        return dict(max_c={"bfloat16": 2}, block_bytes=4 << 20,
                    vmem_limit=64 << 20)
    if "v6" in kind:
        # 918 TF/s bf16 vs 1.4 TB/s -> bf16 C<=8 is memory-bound.
        return dict(max_c={"bfloat16": 8}, block_bytes=4 << 20,
                    vmem_limit=64 << 20)
    if ("v7" in kind) or ("tpu7" in kind):
        # 3.2 TB/s HBM, 64 MiB VMEM -> cap C, smaller VMEM budget.
        return dict(max_c={"bfloat16": 4}, block_bytes=2 << 20,
                    vmem_limit=32 << 20)
    # Unknown generation: conservative defaults.
    return dict(max_c={"bfloat16": 4}, block_bytes=2 << 20,
                vmem_limit=32 << 20)


def _mxu_channel_cap(dtype):
    """Max channel count allowed on the MXU interleave path for this dtype."""
    return _gen_config()["max_c"].get(jnp.dtype(dtype).name, 0)


# ----------------------------------------------------------------------------
# Channels-last specialisation:  dims == (0, 2, ..., ndim-1, 1)
# ----------------------------------------------------------------------------
def _is_channels_last_perm(dims):
    """dims == (0, 2, 3, ..., ndim-1, 1): move axis 1 to the end (NCHW->NHWC)."""
    n = len(dims)
    return (n >= 3 and dims[0] == 0 and dims[-1] == 1
            and tuple(dims[1:-1]) == tuple(range(2, n)))


@functools.lru_cache(maxsize=None)
def _interleave_matrices(c, dtype_name):
    """(C, 128, C*128) stack of 0/1 matrices.

    out[r, j] = sum_ch  x[ch, r, :] @ P[ch]  ==  x[j % C, r, j // C]
    """
    w2 = c * _LANES
    kk = np.arange(_LANES)[:, None]
    jj = np.arange(w2)[None, :]
    mats = np.stack(
        [((jj % c == ch) & (jj // c == kk)) for ch in range(c)], axis=0
    ).astype(np.float32)
    return jnp.asarray(mats, dtype=dtype_name)


def _pick_row_block(rows_total, c, itemsize, block_bytes):
    """Row-block: biggest tile under the byte target, aligned to the dtype's
    packed-sublane multiple (8 f32 / 16 bf16 / 32 int8); full extent if the
    whole thing fits.  Non-divisible row counts are handled by a cdiv grid
    with a masked partial last block (never drops to XLA)."""
    cap = max(1, block_bytes // (c * _LANES * itemsize))
    if rows_total <= cap:
        return rows_total                      # full extent: always legal
    align = 8 * (4 // itemsize)
    r = (cap // align) * align
    return r if r >= align else rows_total


def _permute_channels_last(x):
    """NC... -> N...C via lane-dense tiles + per-channel MXU interleave.

    Returns None if the shape/dtype/generation does not fit this path.
    """
    n, c = x.shape[0], x.shape[1]
    hw = math.prod(x.shape[2:])
    dtype = x.dtype
    itemsize = jnp.dtype(dtype).itemsize

    if c < 2 or c > _mxu_channel_cap(dtype):
        return None
    if hw % _LANES != 0:
        return None

    cfg = _gen_config()
    rows_total = hw // _LANES
    r_blk = _pick_row_block(rows_total, c, itemsize, cfg["block_bytes"])
    w2 = c * _LANES

    # Free layout plumbing (contiguous reshapes only):
    #   input  : (N, C, H, W)       -> (N, C, HW/128, 128)   lane-dense loads
    #   output : (N, HW/128, C*128) -> (N, H, W, C)          lane-dense stores
    x4 = x.reshape(n, c, rows_total, _LANES)
    perm = _interleave_matrices(c, jnp.dtype(dtype).name)   # cached per (C, dtype)

    # Both grid axes are "parallel"; on v7x the row-tile axis keeps both
    # TensorCores busy even when N == 1.
    grid = (n, pl.cdiv(rows_total, r_blk))

    def kernel(x_ref, p_ref, o_ref):
        # x_ref: (1, C, R, 128)   p_ref: (C, 128, C*128)   o_ref: (1, R, C*128)
        # Per-channel matmul-accumulate (no concat, no big VMEM temp).
        acc = jnp.dot(x_ref[0, 0], p_ref[0],
                      preferred_element_type=jnp.float32)
        for ch in range(1, c):
            acc = acc + jnp.dot(x_ref[0, ch], p_ref[ch],
                                preferred_element_type=jnp.float32)
        o_ref[0] = acc.astype(o_ref.dtype)

    out3 = pl.pallas_call(
        kernel,
        out_shape=jax.ShapeDtypeStruct((n, rows_total, w2), dtype),
        grid_spec=pltpu.PrefetchScalarGridSpec(
            num_scalar_prefetch=0,
            grid=grid,
            in_specs=[
                pl.BlockSpec((1, c, r_blk, _LANES), lambda b, t: (b, 0, t, 0)),
                # Constant operand: whole array resident in VMEM, single copy,
                # fetched once (no double-buffering of the permutation matrix).
                pl.BlockSpec(memory_space=pltpu.MemorySpace.VMEM),
            ],
            out_specs=pl.BlockSpec((1, r_blk, w2), lambda b, t: (b, t, 0)),
        ),
        compiler_params=pltpu.CompilerParams(
            dimension_semantics=("parallel", "parallel"),
            vmem_limit_bytes=cfg["vmem_limit"],
        ),
        # Honest advisory cost: this is data movement, not a matmul.
        cost_estimate=pl.CostEstimate(
            flops=0,
            transcendentals=0,
            bytes_accessed=2 * x.size * itemsize + perm.size * itemsize,
        ),
    )(x4, perm)

    return out3.reshape((n,) + tuple(x.shape[2:]) + (c,))


# ----------------------------------------------------------------------------
# Tiled last-two-axes transpose:  dims == (0, 1, ..., ndim-1, ndim-2)
# ----------------------------------------------------------------------------
def _transpose_last_two_pallas(x, dims):
    """Swap the last two axes with a 2-D-tiled kernel (per-tile transposes
    pipeline against the DMA; replaces the old whole-slab fallback)."""
    nd = x.ndim
    if nd < 2 or dims != tuple(range(nd - 2)) + (nd - 1, nd - 2):
        return None
    itemsize = jnp.dtype(x.dtype).itemsize
    if itemsize not in (2, 4):
        return None

    m, n_ = x.shape[-2], x.shape[-1]
    b = math.prod(x.shape[:-2]) if nd > 2 else 1
    x3 = x.reshape(b, m, n_)

    tile = 512                                 # 1 MiB f32 / 0.5 MiB bf16 blocks
    tm = m if m <= tile else tile              # tile is a multiple of 8/16/128
    tn = n_ if n_ <= tile else tile
    grid = (b, pl.cdiv(m, tm), pl.cdiv(n_, tn))

    def kernel(x_ref, o_ref):
        o_ref[0] = jnp.transpose(x_ref[0], (1, 0))

    out3 = pl.pallas_call(
        kernel,
        out_shape=jax.ShapeDtypeStruct((b, n_, m), x.dtype),
        grid_spec=pltpu.PrefetchScalarGridSpec(
            num_scalar_prefetch=0,
            grid=grid,
            in_specs=[pl.BlockSpec((1, tm, tn), lambda bb, i, j: (bb, i, j))],
            out_specs=pl.BlockSpec((1, tn, tm), lambda bb, i, j: (bb, j, i)),
        ),
        compiler_params=pltpu.CompilerParams(
            dimension_semantics=("parallel", "parallel", "parallel"),
            vmem_limit_bytes=_gen_config()["vmem_limit"],
        ),
        cost_estimate=pl.CostEstimate(
            flops=0, transcendentals=0,
            bytes_accessed=2 * x.size * itemsize),
    )(x3)

    return out3.reshape(tuple(x.shape[d] for d in dims))


# ----------------------------------------------------------------------------
# Dispatcher + module wrapper
# ----------------------------------------------------------------------------
def permute_pallas(x: jax.Array, dims, *, min_pallas_bytes=_FAST_PATH_BYTES):
    """Pallas equivalent of torch.permute(x, dims)."""
    dims = tuple(int(d) for d in dims)
    assert sorted(dims) == list(range(x.ndim)), "dims must be a permutation"

    if dims == tuple(range(x.ndim)):
        return x

    # Tiny tensors: pallas_call dispatch / per-step overhead dominates.
    if x.size * jnp.dtype(x.dtype).itemsize < min_pallas_bytes:
        return jnp.transpose(x, dims)

    if _is_channels_last_perm(dims):
        out = _permute_channels_last(x)
        if out is not None:
            return out

    out = _transpose_last_two_pallas(x, dims)
    if out is not None:
        return out

    # TODO(synk): Pallas paths for arbitrary permutations, f32 / large-C
    # channels-last (non-MXU VPU/XLU interleave) instead of deferring to XLA.
    return jnp.transpose(x, dims)


class Permute:
    """Mirror of the PyTorch module: stateless, holds `dims`."""

    def __init__(self, dims):
        self.dims = list(dims)

    def __call__(self, x: jax.Array) -> jax.Array:
        return permute_pallas(x, self.dims)


if __name__ == "__main__":
    key = jax.random.PRNGKey(0)
    k1, k2, k3, k4 = jax.random.split(key, 4)

    dims = [0, 2, 3, 1]  # NCHW -> NHWC
    module = Permute(dims)

    # 1) The module's reference configuration (tiny f32 NCHW feature map).
    #    Routes through the small-input fast path; bit-exact.
    x_small = jax.random.normal(k1, (2, 4, 16, 16), dtype=jnp.float32)
    out_small = jax.block_until_ready(module(x_small))
    ref_small = jnp.transpose(x_small, dims)
    assert out_small.shape == ref_small.shape == (2, 16, 16, 4)
    assert out_small.dtype == ref_small.dtype
    assert bool(jnp.array_equal(out_small, ref_small)), "fast-path mismatch"

    # 2) bf16, C=2 forced through the lane-dense MXU interleave kernel
    #    (within every generation's channel cap).  Exact -> array_equal.
    x_c2 = jax.random.normal(k2, (2, 2, 16, 16), dtype=jnp.bfloat16)
    out_c2 = jax.block_until_ready(permute_pallas(x_c2, dims, min_pallas_bytes=0))
    assert bool(jnp.array_equal(out_c2, jnp.transpose(x_c2, dims))), \
        "channels-last Pallas kernel mismatch (bf16, C=2)"

    # 3) bf16, C=4 with larger spatial dims.  Runs the Pallas kernel on
    #    v6e/v7x/default; on v5e (bf16 cap 2) it transparently falls back to
    #    XLA -- exact either way.
    x_c4 = jax.random.normal(k3, (2, 4, 64, 64), dtype=jnp.bfloat16)
    out_c4 = jax.block_until_ready(permute_pallas(x_c4, dims, min_pallas_bytes=0))
    ref_c4 = jnp.transpose(x_c4, dims)
    assert out_c4.shape == ref_c4.shape == (2, 64, 64, 4)
    assert bool(jnp.array_equal(out_c4, ref_c4)), \
        "channels-last Pallas kernel mismatch (bf16, C=4)"

    # 4) f32 last-two-axes swap through the tiled transpose kernel.
    x_t = jax.random.normal(k4, (2, 192, 256), dtype=jnp.float32)
    out_t = jax.block_until_ready(
        permute_pallas(x_t, (0, 2, 1), min_pallas_bytes=0))
    assert bool(jnp.array_equal(out_t, jnp.transpose(x_t, (0, 2, 1)))), \
        "tiled transpose Pallas kernel mismatch"

    print("KERNEL_OK")
</pallas_src>

<mosaic_0001>
module attributes {stable_mosaic.version = 11 : i64} {
  func.func @kernel(%arg0: i32, %arg1: i32, %arg2: memref<1x2x2x128xbf16, #tpu.memory_space<vmem>>, %arg3: memref<2x128x256xbf16, #tpu.memory_space<vmem>>, %arg4: memref<1x2x256xbf16, #tpu.memory_space<vmem>>) attributes {dimension_semantics = [#tpu.dimension_semantics<parallel>, #tpu.dimension_semantics<parallel>], iteration_bounds = array<i64: 2, 1>, scalar_prefetch = 0 : i64, scratch_operands = 0 : i64, tpu.core_type = #tpu.core_type<tc>, window_params = [{transform_indices = @transform_0, window_bounds = array<i64: 1, 2, 2, 128>}, {pipeline_mode = #tpu.pipeline_mode<synchronous>, transform_indices = @transform_1, window_bounds = array<i64: 2, 128, 256>}, {transform_indices = @transform_2, window_bounds = array<i64: 1, 2, 256>}]} {
    %c0 = arith.constant 0 : index
    %c0_0 = arith.constant 0 : index
    %c0_1 = arith.constant 0 : index
    %c0_2 = arith.constant 0 : index
    %0 = vector.load %arg2[%c0, %c0_0, %c0_1, %c0_2] : memref<1x2x2x128xbf16, #tpu.memory_space<vmem>>, vector<1x1x2x128xbf16>
    %1 = vector.shape_cast %0 : vector<1x1x2x128xbf16> to vector<2x128xbf16>
    %c0_3 = arith.constant 0 : index
    %c0_4 = arith.constant 0 : index
    %c0_5 = arith.constant 0 : index
    %2 = vector.load %arg3[%c0_3, %c0_4, %c0_5] : memref<2x128x256xbf16, #tpu.memory_space<vmem>>, vector<1x128x256xbf16>
    %3 = vector.shape_cast %2 : vector<1x128x256xbf16> to vector<128x256xbf16>
    %cst = arith.constant dense<0.000000e+00> : vector<2x256xf32>
    %4 = tpu.matmul %1, %3, %cst {dimension_numbers = #tpu.dot_dimension_numbers<[1], [0], [0], [1], [0, 0, 1, 1], [], []>} : vector<2x128xbf16>, vector<128x256xbf16>, vector<2x256xf32> -> vector<2x256xf32>
    %c0_6 = arith.constant 0 : index
    %c1 = arith.constant 1 : index
    %c0_7 = arith.constant 0 : index
    %c0_8 = arith.constant 0 : index
    %5 = vector.load %arg2[%c0_6, %c1, %c0_7, %c0_8] : memref<1x2x2x128xbf16, #tpu.memory_space<vmem>>, vector<1x1x2x128xbf16>
    %6 = vector.shape_cast %5 : vector<1x1x2x128xbf16> to vector<2x128xbf16>
    %c1_9 = arith.constant 1 : index
    %c0_10 = arith.constant 0 : index
    %c0_11 = arith.constant 0 : index
    %7 = vector.load %arg3[%c1_9, %c0_10, %c0_11] : memref<2x128x256xbf16, #tpu.memory_space<vmem>>, vector<1x128x256xbf16>
    %8 = vector.shape_cast %7 : vector<1x128x256xbf16> to vector<128x256xbf16>
    %cst_12 = arith.constant dense<0.000000e+00> : vector<2x256xf32>
    %9 = tpu.matmul %6, %8, %cst_12 {dimension_numbers = #tpu.dot_dimension_numbers<[1], [0], [0], [1], [0, 0, 1, 1], [], []>} : vector<2x128xbf16>, vector<128x256xbf16>, vector<2x256xf32> -> vector<2x256xf32>
    %10 = arith.addf %4, %9 : vector<2x256xf32>
    %11 = arith.truncf %10 : vector<2x256xf32> to vector<2x256xbf16>
    %c0_13 = arith.constant 0 : index
    %c0_14 = arith.constant 0 : index
    %c0_15 = arith.constant 0 : index
    %12 = vector.load %arg4[%c0_13, %c0_14, %c0_15] : memref<1x2x256xbf16, #tpu.memory_space<vmem>>, vector<1x2x256xbf16>
    %13 = vector.shape_cast %12 : vector<1x2x256xbf16> to vector<2x256xbf16>
    %14 = vector.shape_cast %11 : vector<2x256xbf16> to vector<1x2x256xbf16>
    tpu.vector_store %arg4[%c0_13, %c0_14, %c0_15], %14 {strides = array<i32>} : memref<1x2x256xbf16, #tpu.memory_space<vmem>>, vector<1x2x256xbf16>,
    return
  }
  func.func @transform_0(%arg0: i32, %arg1: i32) -> (i32, i32, i32, i32) {
    %c0_i32 = arith.constant 0 : i32
    %c0_i32_0 = arith.constant 0 : i32
    %c0_i32_1 = arith.constant 0 : i32
    return %arg0, %c0_i32, %arg1, %c0_i32_0 : i32, i32, i32, i32
  }
  func.func @transform_1(%arg0: i32, %arg1: i32) -> (i32, i32, i32) {
    %c0_i32 = arith.constant 0 : i32
    %c0_i32_0 = arith.constant 0 : i32
    %c0_i32_1 = arith.constant 0 : i32
    %c0_i32_2 = arith.constant 0 : i32
    return %c0_i32, %c0_i32_0, %c0_i32_1 : i32, i32, i32
  }
  func.func @transform_2(%arg0: i32, %arg1: i32) -> (i32, i32, i32) {
    %c0_i32 = arith.constant 0 : i32
    %c0_i32_0 = arith.constant 0 : i32
    return %arg0, %arg1, %c0_i32 : i32, i32, i32
  }
}

</mosaic_0001>

<llo_original>
// kernel: tpu_custom_call.1
$region0: #{tpu_custom_call.1}
  #allocation0 [shape = 'u32[]', space=smem, size = 0x4, offset = 0x4, fixed_abs, tag = 'smem constant byte address 0x4 - core index']
  #allocation1 [shape = 'u32[144,128]{1,0:T(1,128)}', space=vmem, size = 0x12000, scoped, tag = 'internal scratch']
  %s0 = inlined_call_operand.hbm [shape: bf16[2,2,2,128], index: 0, kind: input, shape index: {}]
  %s1 = inlined_call_operand.hbm [shape: bf16[2,128,256], index: 1, kind: input, shape index: {}]
  %s2 = inlined_call_operand.hbm [shape: bf16[2,2,256], index: 2, kind: output, shape index: {}]
  %s3 = sld [smem:[#allocation0]]
  $region49: #{tpu_custom_call.1} parent=0
    _
  %s5 = ssub.s32 1, %s3
  %s6 = scalar_select 0, %s5, %s3
  $region1: #{tpu_custom_call.1} parent=0
    #allocation2 [shape = 'u8[2048]{0}', space=vmem, size = 0x800, scoped, tag = 'input window, operand 0']
    #allocation3 [shape = 's32[2]{0}', space=sflag, size = 0x8, scoped, tag = 'scoped memory for tpu_custom_call.1']
    #allocation4 [shape = 's32[2]{0}', space=sflag, size = 0x8, scoped, tag = 'scoped memory for tpu_custom_call.1']
    #allocation5 [shape = 'u8[131072]{0}', space=vmem, size = 0x20000, scoped, tag = 'input window, operand 1, single buffered']
    #allocation6 [shape = 's32[1]{0}', space=sflag, size = 0x4, scoped, tag = 'scoped memory for tpu_custom_call.1']
    #allocation7 [shape = 'u8[2048]{0}', space=vmem, size = 0x800, scoped, tag = 'output window, operand 0']
    %7 = vsyncpa [#allocation3], 0
    %s8 = scalar_lea.sflag [#allocation3], 1
    %9 = vsyncpa %s8, 0
    %10 = vsyncpa [#allocation6], 0
    %11 = vsyncpa [#allocation4], 0
    %s12 = scalar_lea.sflag [#allocation4], 1
    %13 = vsyncpa %s12, 0
    loop: start=0, step=1, limit=4
    $region2: #{tpu_custom_call.1} parent=1 // loop_pre_header
      _
    $region3: #{tpu_custom_call.1} parent=1 // loop_header
      %s15 = sphi 0, %s19
      %p16 = scmp.ge.s32.totalorder %s15, 4
      %s22 = sphi 0, %s34
      %s23 = sphi 0, %s30
      %s24 = sphi 0, %s22
      %s25 = sphi 0, %s23
      %s26 = sphi 0, %s24
      %s27 = sphi 0, %s25
      %s39 = sphi 0, %s41
      %s42 = sphi 0, %s39
      %s43 = sphi 0, %s42
      %s59 = sphi 0, %s43
      %s63 = sphi 0, %s63
      %s65 = sphi 0, %s63
      %s66 = sphi 0, %s65
      %s80 = sphi 0, %s66
      %s88 = sphi 0, %s90
      %s91 = sphi 0, %s88
      %s92 = sphi 0, %s91
      %s108 = sphi 0, %s92
    $region4: #{tpu_custom_call.1} parent=1 // loop_header_branch
      %18 = sbr.rel (%p16) target = $region8
    $region5: #{tpu_custom_call.1} parent=1 // loop_body
      %s20 = ssub.s32 %s15, 1
      %s21 = ssub.s32 %s15, 2
      %s28 = sadd.s32 1, %s23
      %p29 = scmp.ge.s32.totalorder %s28, 1
      %s30 = scalar_select %p29, 0, %s28
      %s31 = sadd.s32 1, %s22
      %s32 = scalar_select %p29, %s31, %s22
      %p33 = scmp.ge.s32.totalorder %s32, 2
      %s34 = scalar_select %p33, 0, %s32
      %s35 = ssub.s32 %s22, %s34
      %s36 = ssub.s32 %s23, %s30
      %s37 = sor.u32 %s35, %s36
      %p38 = scmp.eq.s32.totalorder %s37, 0
      %s40 = sadd.s32 %s39, 1
      %s41 = scalar_select %p38, %s39, %s40
      %p44 = pneg %p38
      %p45 = scmp.eq.s32.totalorder %s15, 1
      %p46 = por %p44, %p45
      %p47 = scmp.ne.s32.totalorder %s39, %s42
      %p48 = scmp.eq.s32.totalorder %s15, 0
      %p49 = por %p47, %p48
      %p50 = scmp.ne.s32.totalorder %s39, %s42
      %p51 = scmp.eq.s32.totalorder %s20, 1
      %p52 = por %p50, %p51
      %p53 = scmp.ne.s32.totalorder %s42, %s43
      %p54 = scmp.eq.s32.totalorder %s20, 0
      %p55 = por %p53, %p54
      %p56 = scmp.ne.s32.totalorder %s42, %s43
      %p57 = scmp.eq.s32.totalorder %s21, 1
      %p58 = por %p56, %p57
      %p60 = scmp.ne.s32.totalorder %s43, %s59
      %p61 = scmp.eq.s32.totalorder %s21, 0
      %p62 = por %p60, %p61
      %s64 = sadd.s32 %s63, 1
      %p67 = scmp.eq.s32.totalorder %s15, 1
      %p68 = scmp.ne.s32.totalorder %s63, %s65
      %p69 = scmp.eq.s32.totalorder %s15, 0
      %p70 = por %p68, %p69
      %p71 = scmp.ne.s32.totalorder %s63, %s65
      %p72 = scmp.eq.s32.totalorder %s20, 1
      %p73 = por %p71, %p72
      %p74 = scmp.ne.s32.totalorder %s65, %s66
      %p75 = scmp.eq.s32.totalorder %s20, 0
      %p76 = por %p74, %p75
      %p77 = scmp.ne.s32.totalorder %s65, %s66
      %p78 = scmp.eq.s32.totalorder %s21, 1
      %p79 = por %p77, %p78
      %p81 = scmp.ne.s32.totalorder %s66, %s80
      %p82 = scmp.eq.s32.totalorder %s21, 0
      %p83 = por %p81, %p82
      %s84 = ssub.s32 %s22, %s34
      %s85 = ssub.s32 %s23, %s30
      %s86 = sor.u32 %s84, %s85
      %p87 = scmp.eq.s32.totalorder %s86, 0
      %s89 = sadd.s32 %s88, 1
      %s90 = scalar_select %p87, %s88, %s89
      %p93 = pneg %p87
      %p94 = scmp.eq.s32.totalorder %s15, 1
      %p95 = por %p93, %p94
      %p96 = scmp.ne.s32.totalorder %s88, %s91
      %p97 = scmp.eq.s32.totalorder %s15, 0
      %p98 = por %p96, %p97
      %p99 = scmp.ne.s32.totalorder %s88, %s91
      %p100 = scmp.eq.s32.totalorder %s20, 1
      %p101 = por %p99, %p100
      %p102 = scmp.ne.s32.totalorder %s91, %s92
      %p103 = scmp.eq.s32.totalorder %s20, 0
      %p104 = por %p102, %p103
      %p105 = scmp.ne.s32.totalorder %s91, %s92
      %p106 = scmp.eq.s32.totalorder %s21, 1
      %p107 = por %p105, %p106
      %p109 = scmp.ne.s32.totalorder %s92, %s108
      %p110 = scmp.eq.s32.totalorder %s21, 0
      %p111 = por %p109, %p110
      %p112 = scmp.le.s32.totalorder 1, %s15
      %p113 = scmp.lt.s32.totalorder %s15, 3
      %p114 = pnand %p112, %p113
      %p115 = pneg %p114
      // Predicated region
      $region9: #{tpu_custom_call.1} parent=5 // pred_check
        _
      $region10: #{tpu_custom_call.1} parent=5 // pred_check_branch
        %117 = sbr.rel (%p114) target = $region12
      $region11: #{tpu_custom_call.1} parent=5 // pred_region
        %s118 = ssub.s32 %s15, 1
        // Predicated region
        $region13: #{tpu_custom_call.1} parent=11 // pred_check
          %p119 = pneg %p76
        $region14: #{tpu_custom_call.1} parent=11 // pred_check_branch
          %121 = sbr.rel (%p119) target = $region16
        $region15: #{tpu_custom_call.1} parent=11 // pred_region
          %s123 = ssub.s32 4096, 4096
          %124 = vsyncadd [#allocation6], %s123
          %s125 = sshll.u32 [#allocation5], 4
          %s126 = int_to_ptr.vmem [resolvable:$true] %s125
          %131 = dma.hbm_to_vmem [thread:$0]  %s1, 4096, %s126, [#allocation6], 128, 128, 8
        $region16: #{tpu_custom_call.1} parent=11 // pred_fallthru
          _
      $region12: #{tpu_custom_call.1} parent=5 // pred_fallthru
        _
      %p132 = scmp.lt.s32.totalorder %s15, 2
      // Predicated region
      $region17: #{tpu_custom_call.1} parent=5 // pred_check
        %p133 = pneg %p132
      $region18: #{tpu_custom_call.1} parent=5 // pred_check_branch
        %135 = sbr.rel (%p133) target = $region20
      $region19: #{tpu_custom_call.1} parent=5 // pred_region
        // Predicated region
        $region21: #{tpu_custom_call.1} parent=19 // pred_check
          %p136 = pneg %p49
        $region22: #{tpu_custom_call.1} parent=19 // pred_check_branch
          %138 = sbr.rel (%p136) target = $region24
        $region23: #{tpu_custom_call.1} parent=19 // pred_region
          %s139 = sand.u32 %s39, 1
          %s140 = scalar_lea.sflag [#allocation3], %s139
          %s141 = sand.u32 %s39, 1
          %s142 = smul.addr %s141, 2
          %s143 = scalar_lea.vmem [#allocation2], %s142
          %s145 = ssub.s32 32, 32
          %146 = vsyncadd %s140, %s145
          %s147 = smul.addr %s22, 2
          %s148 = sadd.s32 %s23, %s147
          %s149 = smul.addr %s148, 16
          %s150 = scalar_lea.hbm %s0, %s149
          %s151 = sshll.u32 %s143, 4
          %s152 = int_to_ptr.vmem [resolvable:$true] %s151
          %157 = dma.hbm_to_vmem [thread:$0]  %s150, 32, %s152, %s140, 16, 16, 1
        $region24: #{tpu_custom_call.1} parent=19 // pred_fallthru
          _
      $region20: #{tpu_custom_call.1} parent=5 // pred_fallthru
        _
      %p158 = scmp.le.s32.totalorder 1, %s15
      %p159 = scmp.lt.s32.totalorder %s15, 3
      %p160 = pnand %p158, %p159
      %p161 = pneg %p160
      // Predicated region
      $region25: #{tpu_custom_call.1} parent=5 // pred_check
        _
      $region26: #{tpu_custom_call.1} parent=5 // pred_check_branch
        %163 = sbr.rel (%p160) target = $region28
      $region27: #{tpu_custom_call.1} parent=5 // pred_region
        %s164 = ssub.s32 %s15, 1
        %s165 = sand.u32 %s42, 1
        %s166 = scalar_lea.sflag [#allocation3], %s165
        %s167 = sand.u32 %s42, 1
        %s168 = smul.addr %s167, 2
        %s169 = scalar_lea.vmem [#allocation2], %s168
        // Predicated region
        $region29: #{tpu_custom_call.1} parent=27 // pred_check
          %p170 = pneg %p55
        $region30: #{tpu_custom_call.1} parent=27 // pred_check_branch
          %172 = sbr.rel (%p170) target = $region32
        $region31: #{tpu_custom_call.1} parent=27 // pred_region
          %173 = dma.done %s166, 32
        $region32: #{tpu_custom_call.1} parent=27 // pred_fallthru
          _
        // Predicated region
        $region33: #{tpu_custom_call.1} parent=27 // pred_check
          %p174 = pneg %p76
        $region34: #{tpu_custom_call.1} parent=27 // pred_check_branch
          %176 = sbr.rel (%p174) target = $region36
        $region35: #{tpu_custom_call.1} parent=27 // pred_region
          %177 = dma.done [#allocation6], 4096
        $region36: #{tpu_custom_call.1} parent=27 // pred_fallthru
          _
        %s178 = sand.u32 %s42, 1
        %s179 = scalar_lea.sflag [#allocation3], %s178
        %s180 = sand.u32 %s42, 1
        %s181 = smul.addr %s180, 2
        %s182 = scalar_lea.vmem [#allocation2], %s181
        %p183 = pneg %p55
        %p184 = pneg %p52
        %p185 = pneg %p76
        %p186 = pneg %p73
        %p187 = pneg %p104
        %p188 = pneg %p101
        %s189 = sand.u32 %s91, 1
        %s190 = scalar_lea.sflag [#allocation4], %s189
        %s191 = sand.u32 %s91, 1
        %s192 = smul.addr %s191, 2
        %s193 = scalar_lea.vmem [#allocation7], %s192
        %v195 = vld [vmem:[%s169] sm:$0x1]
        %v196 = vld [vmem:[#allocation5] sm:$0xff]
        %v197 = vld [vmem:[#allocation5 + $0x8] sm:$0xff]
        %v198 = vld [vmem:[#allocation5 + $0x10] sm:$0xff]
        %v199 = vld [vmem:[#allocation5 + $0x18] sm:$0xff]
        %v200 = vld [vmem:[#allocation5 + $0x20] sm:$0xff]
        %v201 = vld [vmem:[#allocation5 + $0x28] sm:$0xff]
        %v202 = vld [vmem:[#allocation5 + $0x30] sm:$0xff]
        %v203 = vld [vmem:[#allocation5 + $0x38] sm:$0xff]
        %v204 = vld [vmem:[#allocation5 + $0x40] sm:$0xff]
        %v205 = vld [vmem:[#allocation5 + $0x48] sm:$0xff]
        %v206 = vld [vmem:[#allocation5 + $0x50] sm:$0xff]
        %v207 = vld [vmem:[#allocation5 + $0x58] sm:$0xff]
        %v208 = vld [vmem:[#allocation5 + $0x60] sm:$0xff]
        %v209 = vld [vmem:[#allocation5 + $0x68] sm:$0xff]
        %v210 = vld [vmem:[#allocation5 + $0x70] sm:$0xff]
        %v211 = vld [vmem:[#allocation5 + $0x78] sm:$0xff]
        %s212 = scalar_lea.vmem %s169, 1 [#allocation2]
        %v213 = vld [vmem:[%s212] sm:$0x1]
        %s214 = scalar_lea.vmem [#allocation5], 128
        %v215 = vld [vmem:[%s214] sm:$0xff]
        %v216 = vld [vmem:[%s214 + $0x8] sm:$0xff]
        %v217 = vld [vmem:[%s214 + $0x10] sm:$0xff]
        %v218 = vld [vmem:[%s214 + $0x18] sm:$0xff]
        %v219 = vld [vmem:[%s214 + $0x20] sm:$0xff]
        %v220 = vld [vmem:[%s214 + $0x28] sm:$0xff]
        %v221 = vld [vmem:[%s214 + $0x30] sm:$0xff]
        %v222 = vld [vmem:[%s214 + $0x38] sm:$0xff]
        %v223 = vld [vmem:[%s214 + $0x40] sm:$0xff]
        %v224 = vld [vmem:[%s214 + $0x48] sm:$0xff]
        %v225 = vld [vmem:[%s214 + $0x50] sm:$0xff]
        %v226 = vld [vmem:[%s214 + $0x58] sm:$0xff]
        %v227 = vld [vmem:[%s214 + $0x60] sm:$0xff]
        %v228 = vld [vmem:[%s214 + $0x68] sm:$0xff]
        %v229 = vld [vmem:[%s214 + $0x70] sm:$0xff]
        %v230 = vld [vmem:[%s214 + $0x78] sm:$0xff]
        %v247 = vunpack.c.l.b16 %v215
        %v248 = vunpack.c.h.b16 %v215
        %v249 = vunpack.c.l.b16 %v216
        %v250 = vunpack.c.h.b16 %v216
        %v251 = vunpack.c.l.b16 %v217
        %v252 = vunpack.c.h.b16 %v217
        %v253 = vunpack.c.l.b16 %v218
        %v254 = vunpack.c.h.b16 %v218
        %v255 = vunpack.c.l.b16 %v219
        %v256 = vunpack.c.h.b16 %v219
        %v257 = vunpack.c.l.b16 %v220
        %v258 = vunpack.c.h.b16 %v220
        %v259 = vunpack.c.l.b16 %v221
        %v260 = vunpack.c.h.b16 %v221
        %v261 = vunpack.c.l.b16 %v222
        %v262 = vunpack.c.h.b16 %v222
        %v263 = vunpack.c.l.b16 %v223
        %v264 = vunpack.c.h.b16 %v223
        %v265 = vunpack.c.l.b16 %v224
        %v266 = vunpack.c.h.b16 %v224
        %v267 = vunpack.c.l.b16 %v225
        %v268 = vunpack.c.h.b16 %v225
        %v269 = vunpack.c.l.b16 %v226
        %v270 = vunpack.c.h.b16 %v226
        %v271 = vunpack.c.l.b16 %v227
        %v272 = vunpack.c.h.b16 %v227
        %v273 = vunpack.c.l.b16 %v228
        %v274 = vunpack.c.h.b16 %v228
        %v275 = vunpack.c.l.b16 %v229
        %v276 = vunpack.c.h.b16 %v229
        %v277 = vunpack.c.l.b16 %v230
        %v278 = vunpack.c.h.b16 %v230
        %v279 = vpack.c.b16 %v249, %v247
        %v280 = vpack.c.b16 %v250, %v248
        %v281 = vpack.c.b16 %v253, %v251
        %v282 = vpack.c.b16 %v254, %v252
        %v283 = vpack.c.b16 %v257, %v255
        %v284 = vpack.c.b16 %v258, %v256
        %v285 = vpack.c.b16 %v261, %v259
        %v286 = vpack.c.b16 %v262, %v260
        %v287 = vpack.c.b16 %v265, %v263
        %v288 = vpack.c.b16 %v266, %v264
        %v289 = vpack.c.b16 %v269, %v267
        %v290 = vpack.c.b16 %v270, %v268
        %v291 = vpack.c.b16 %v273, %v271
        %v292 = vpack.c.b16 %v274, %v272
        %v293 = vpack.c.b16 %v277, %v275
        %v294 = vpack.c.b16 %v278, %v276
        %311 = vmatprep.subr.bf16.mxu0 %v294
        %312 = vmatpush1.bf16.msra.mxu0 %v293
        %313 = vmatprep.subr.bf16.mxu0 %v292
        %314 = vmatpush1.bf16.msra.mxu0 %v291
        %315 = vmatprep.subr.bf16.mxu0 %v290
        %316 = vmatpush1.bf16.msra.mxu0 %v289
        %317 = vmatprep.subr.bf16.mxu0 %v288
        %318 = vmatpush1.bf16.msra.mxu0 %v287
        %319 = vmatprep.subr.bf16.mxu0 %v286
        %320 = vmatpush1.bf16.msra.mxu0 %v285
        %321 = vmatprep.subr.bf16.mxu0 %v284
        %322 = vmatpush1.bf16.msra.mxu0 %v283
        %323 = vmatprep.subr.bf16.mxu0 %v282
        %324 = vmatpush1.bf16.msra.mxu0 %v281
        %325 = vmatprep.subr.bf16.mxu0 %v280
        %326 = vmatpush1.bf16.msra.mxu0 %v279
        %327 = vmatprep.subr.bf16.mxu0 0
        %328 = vmatpush2.bf16.msra.mxu0 0
        %329 = vmatprep.subr.bf16.mxu0 0
        %330 = vmatpush2.bf16.msra.mxu0 0
        %331 = vmatprep.subr.bf16.mxu0 0
        %332 = vmatpush2.bf16.msra.mxu0 0
        %333 = vmatprep.subr.bf16.mxu0 0
        %334 = vmatpush2.bf16.msra.mxu0 0
        %335 = vmatprep.subr.bf16.mxu0 0
        %336 = vmatpush2.bf16.msra.mxu0 0
        %337 = vmatprep.subr.bf16.mxu0 0
        %338 = vmatpush2.bf16.msra.mxu0 0
        %339 = vmatprep.subr.bf16.mxu0 0
        %340 = vmatpush2.bf16.msra.mxu0 0
        %341 = vmatprep.subr.bf16.mxu0 0
        %342 = vmatpush2.bf16.msra.mxu0 0
        %343 = vmatprep.mubr.bf16.mxu0 0
        %344 = vmatmul.mubr.bf16.gmra.mxu0 %v213
        %v345 = vpop.f32.mrf.mxu0
        %v346 = vadd.f32 0.0, %v345
        %v347 = vpop.f32.mrf.mxu0
        %v348 = vadd.f32 0.0, %v347
        %v349 = vpop.f32.mrf.mxu0
        %v350 = vpop.f32.mrf.mxu0
        %351 = vdwg.mxu0
        %v368 = vunpack.c.l.b16 %v196
        %v369 = vunpack.c.h.b16 %v196
        %v370 = vunpack.c.l.b16 %v197
        %v371 = vunpack.c.h.b16 %v197
        %v372 = vunpack.c.l.b16 %v198
        %v373 = vunpack.c.h.b16 %v198
        %v374 = vunpack.c.l.b16 %v199
        %v375 = vunpack.c.h.b16 %v199
        %v376 = vunpack.c.l.b16 %v200
        %v377 = vunpack.c.h.b16 %v200
        %v378 = vunpack.c.l.b16 %v201
        %v379 = vunpack.c.h.b16 %v201
        %v380 = vunpack.c.l.b16 %v202
        %v381 = vunpack.c.h.b16 %v202
        %v382 = vunpack.c.l.b16 %v203
        %v383 = vunpack.c.h.b16 %v203
        %v384 = vunpack.c.l.b16 %v204
        %v385 = vunpack.c.h.b16 %v204
        %v386 = vunpack.c.l.b16 %v205
        %v387 = vunpack.c.h.b16 %v205
        %v388 = vunpack.c.l.b16 %v206
        %v389 = vunpack.c.h.b16 %v206
        %v390 = vunpack.c.l.b16 %v207
        %v391 = vunpack.c.h.b16 %v207
        %v392 = vunpack.c.l.b16 %v208
        %v393 = vunpack.c.h.b16 %v208
        %v394 = vunpack.c.l.b16 %v209
        %v395 = vunpack.c.h.b16 %v209
        %v396 = vunpack.c.l.b16 %v210
        %v397 = vunpack.c.h.b16 %v210
        %v398 = vunpack.c.l.b16 %v211
        %v399 = vunpack.c.h.b16 %v211
        %v400 = vpack.c.b16 %v370, %v368
        %v401 = vpack.c.b16 %v371, %v369
        %v402 = vpack.c.b16 %v374, %v372
        %v403 = vpack.c.b16 %v375, %v373
        %v404 = vpack.c.b16 %v378, %v376
        %v405 = vpack.c.b16 %v379, %v377
        %v406 = vpack.c.b16 %v382, %v380
        %v407 = vpack.c.b16 %v383, %v381
        %v408 = vpack.c.b16 %v386, %v384
        %v409 = vpack.c.b16 %v387, %v385
        %v410 = vpack.c.b16 %v390, %v388
        %v411 = vpack.c.b16 %v391, %v389
        %v412 = vpack.c.b16 %v394, %v392
        %v413 = vpack.c.b16 %v395, %v393
        %v414 = vpack.c.b16 %v398, %v396
        %v415 = vpack.c.b16 %v399, %v397
        %432 = vmatprep.subr.bf16.mxu0 %v415
        %433 = vmatpush1.bf16.msra.mxu0 %v414
        %434 = vmatprep.subr.bf16.mxu0 %v413
        %435 = vmatpush1.bf16.msra.mxu0 %v412
        %436 = vmatprep.subr.bf16.mxu0 %v411
        %437 = vmatpush1.bf16.msra.mxu0 %v410
        %438 = vmatprep.subr.bf16.mxu0 %v409
        %439 = vmatpush1.bf16.msra.mxu0 %v408
        %440 = vmatprep.subr.bf16.mxu0 %v407
        %441 = vmatpush1.bf16.msra.mxu0 %v406
        %442 = vmatprep.subr.bf16.mxu0 %v405
        %443 = vmatpush1.bf16.msra.mxu0 %v404
        %444 = vmatprep.subr.bf16.mxu0 %v403
        %445 = vmatpush1.bf16.msra.mxu0 %v402
        %446 = vmatprep.subr.bf16.mxu0 %v401
        %447 = vmatpush1.bf16.msra.mxu0 %v400
        %448 = vmatprep.subr.bf16.mxu0 0
        %449 = vmatpush2.bf16.msra.mxu0 0
        %450 = vmatprep.subr.bf16.mxu0 0
        %451 = vmatpush2.bf16.msra.mxu0 0
        %452 = vmatprep.subr.bf16.mxu0 0
        %453 = vmatpush2.bf16.msra.mxu0 0
        %454 = vmatprep.subr.bf16.mxu0 0
        %455 = vmatpush2.bf16.msra.mxu0 0
        %456 = vmatprep.subr.bf16.mxu0 0
        %457 = vmatpush2.bf16.msra.mxu0 0
        %458 = vmatprep.subr.bf16.mxu0 0
        %459 = vmatpush2.bf16.msra.mxu0 0
        %460 = vmatprep.subr.bf16.mxu0 0
        %461 = vmatpush2.bf16.msra.mxu0 0
        %462 = vmatprep.subr.bf16.mxu0 0
        %463 = vmatpush2.bf16.msra.mxu0 0
        %464 = vmatprep.mubr.bf16.mxu0 0
        %465 = vmatmul.mubr.bf16.gmra.mxu0 %v195
        %v466 = vpop.f32.mrf.mxu0
        %v467 = vadd.f32 %v346, %v466
        %v468 = vpop.f32.mrf.mxu0
        %v469 = vadd.f32 %v348, %v468
        %v470 = vpop.f32.mrf.mxu0
        %v471 = vpop.f32.mrf.mxu0
        %472 = vdwg.mxu0
        %v473 = vpack.c.bf16 %v467, %v467
        %v474 = vpack.c.bf16 %v469, %v469
        %v477 = vcombine.low %v473, %v474
        %v479 = vunpack.c.l.s4 1966171168
        %v480 = vunpack.c.0.s8 %v479
        %v481 = vlaneseq
        %v482 = vshrl.u32 %v481, 7
        %v483 = vsub.s32 %v480, %v482
        %v484 = vrot.slane %v477, %v483
        %v486 = vunpack.c.l.s4 1966171168
        %v487 = vunpack.c.0.s8 %v486
        %v488 = vlaneseq
        %v489 = vshrl.u32 %v488, 7
        %v490 = vsub.s32 %v487, %v489
        %v491 = vrot.slane %v484, %v490
        %493 = vst [vmem:[%s193] sm:$0x3] %v491
        %s494 = sand.u32 %s91, 1
        %s495 = scalar_lea.sflag [#allocation4], %s494
        %s496 = sand.u32 %s91, 1
        %s497 = smul.addr %s496, 2
        %s498 = scalar_lea.vmem [#allocation7], %s497
        // Predicated region
        $region37: #{tpu_custom_call.1} parent=27 // pred_check
          %p499 = pneg %p101
        $region38: #{tpu_custom_call.1} parent=27 // pred_check_branch
          %501 = sbr.rel (%p499) target = $region40
        $region39: #{tpu_custom_call.1} parent=27 // pred_region
          %s503 = ssub.s32 32, 32
          %504 = vsyncadd %s495, %s503
          %s505 = smul.addr %s25, 2
          %s506 = smul.addr %s24, 2
          %s507 = sadd.s32 %s505, %s506
          %s508 = smul.addr %s507, 16
          %s509 = scalar_lea.hbm %s2, %s508
          %s511 = sshll.u32 %s498, 4
          %s512 = int_to_ptr.vmem [resolvable:$true] %s511
          %514 = dma.vmem_to_hbm [thread:$0]  %s512, 32, %s509, %s495
        $region40: #{tpu_custom_call.1} parent=27 // pred_fallthru
          _
      $region28: #{tpu_custom_call.1} parent=5 // pred_fallthru
        _
      %p515 = scmp.le.s32.totalorder 2, %s15
      // Predicated region
      $region41: #{tpu_custom_call.1} parent=5 // pred_check
        %p516 = pneg %p515
      $region42: #{tpu_custom_call.1} parent=5 // pred_check_branch
        %518 = sbr.rel (%p516) target = $region44
      $region43: #{tpu_custom_call.1} parent=5 // pred_region
        %s519 = ssub.s32 %s15, 2
        // Predicated region
        $region45: #{tpu_custom_call.1} parent=43 // pred_check
          %p520 = pneg %p107
        $region46: #{tpu_custom_call.1} parent=43 // pred_check_branch
          %522 = sbr.rel (%p520) target = $region48
        $region47: #{tpu_custom_call.1} parent=43 // pred_region
          %s523 = sand.u32 %s92, 1
          %s524 = scalar_lea.sflag [#allocation4], %s523
          %s525 = sand.u32 %s92, 1
          %s526 = smul.addr %s525, 2
          %s527 = scalar_lea.vmem [#allocation7], %s526
          %528 = dma.done %s524, 32
        $region48: #{tpu_custom_call.1} parent=43 // pred_fallthru
          _
      $region44: #{tpu_custom_call.1} parent=5 // pred_fallthru
        _
    $region6: #{tpu_custom_call.1} parent=1 // loop_footer
      %s19 = sadd.s32 1, %s15
    $region7: #{tpu_custom_call.1} parent=1 // loop_footer_branch
      %14 = sbr.rel target = $region3
    $region8: #{tpu_custom_call.1} parent=1 // loop_exit
      _
    %529 = vsyncpa [#allocation3], 1
    %s530 = scalar_lea.sflag [#allocation3], 1
    %531 = vsyncpa %s530, 1
    %532 = vsyncpa [#allocation6], 1
    %533 = vsyncpa [#allocation4], 1
    %s534 = scalar_lea.sflag [#allocation4], 1
    %535 = vsyncpa %s534, 1

</llo_original>
